<compile_context>
chip_gen: v7x
topology: tpu7x:2x2x1
jax: 0.10.0
libtpu: 0.0.40
codegen_flags: <defaults>
</compile_context>

<pallas_src>
import math
import functools

import jax
import jax.numpy as jnp
from jax import lax
from jax.experimental import pallas as pl
from jax.experimental.pallas import tpu as pltpu


# ---------------------------------------------------------------------------
# Generation-dependent config
# ---------------------------------------------------------------------------

def _tpu_memory_config():
    """Per-generation (vmem_limit_bytes, query_tile_target)."""
    try:
        vmem_cap = int(pltpu.get_tpu_info().vmem_capacity_bytes)
    except Exception:
        vmem_cap = 64 * 1024 * 1024          # conservative: v7x-sized VMEM
    if vmem_cap >= 100 * 1024 * 1024:        # v5e / v6e: 128 MiB physical VMEM
        return 96 * 1024 * 1024, 512
    return 48 * 1024 * 1024, 256             # v7x: 64 MiB physical VMEM


_VMEM_LIMIT_BYTES, _TQ_TARGET = _tpu_memory_config()


def _round_up(x, m):
    return ((x + m - 1) // m) * m


def _choose_query_tile(seq_len, target):
    """Query tile: multiple of 16 (bf16 sublane packing). Prefer divisors of
    seq_len (no padding); otherwise pick the largest tile with small padding
    waste (queries are zero-padded and the padded rows are sliced off)."""
    if seq_len <= target:
        return _round_up(seq_len, 16)
    for t in range(target - target % 16, 15, -16):
        if seq_len % t == 0:
            return t
    for t in range(target - target % 16, 15, -16):
        if _round_up(seq_len, t) - seq_len <= max(seq_len // 8, 16):
            return t
    return 16


def _choose_divisor_tile(seq_len, target=512):
    """Sequence tile for the KV-stats kernel: must divide seq_len exactly."""
    if seq_len <= target:
        return seq_len
    for align in (16, 8):
        for t in range(target - target % align, align - 1, -align):
            if seq_len % t == 0:
                return t
    return seq_len


# ---------------------------------------------------------------------------
# Kernel 1: Performer per-(batch, head) KV summaries, streamed over S
#   kv[b]   = concat_h( relu(K_h Wf + bf)^T V_h )   -> (R, E) bf16, lane-dense
#   ksum[b] = per-head sum over sequence of features -> (H, R) f32
# ---------------------------------------------------------------------------

def _performer_kv_stats_kernel(k_ref, v_ref, wf_ref, bf_ref, kv_ref, ksum_ref,
                               kv_acc, ks_acc, *, num_heads, head_dim):
    f32 = jnp.float32
    bf16 = jnp.bfloat16
    si = pl.program_id(1)

    @pl.when(si == 0)
    def _init():
        kv_acc[...] = jnp.zeros_like(kv_acc)
        ks_acc[...] = jnp.zeros_like(ks_acc)

    k = k_ref[0]            # (TS, E) bf16
    v = v_ref[0]            # (TS, E) bf16
    wf = wf_ref[...]        # (D, R)  bf16
    bfm = bf_ref[...]       # (1, R)  f32

    # TODO(synk): per-head (TS,D)@(D,R) matmuls underfill the 256-wide MXU on
    # v6e/v7x; batching the shared feature-map matmul needs a head->sublane
    # relayout that was judged not worth it at head_dim=64.
    for h in range(num_heads):
        lo = h * head_dim
        kh = k[:, lo:lo + head_dim]                                   # (TS, D)
        vh = v[:, lo:lo + head_dim]                                   # (TS, D)
        kp = jnp.maximum(
            jnp.dot(kh, wf, preferred_element_type=f32) + bfm, 0.0)   # (TS, R)
        kvh = lax.dot_general(kp.astype(bf16), vh,
                              dimension_numbers=(((0,), (0,)), ((), ())),
                              preferred_element_type=f32)             # (R, D)
        kv_acc[:, lo:lo + head_dim] += kvh
        ks_acc[h:h + 1, :] += kp.sum(axis=0, keepdims=True)           # (1, R)

    @pl.when(si == pl.num_programs(1) - 1)
    def _finalize():
        kv_ref[0] = kv_acc[...].astype(kv_ref.dtype)   # bf16 writeback
        ksum_ref[0] = ks_acc[...]


def performer_kv_stats(pf_k, pf_v, wf_bf16, bf, *, num_heads, head_dim):
    B, S, E = pf_k.shape
    D, R = wf_bf16.shape
    TS = _choose_divisor_tile(S)
    SB = S // TS
    kernel = functools.partial(_performer_kv_stats_kernel,
                               num_heads=num_heads, head_dim=head_dim)
    return pl.pallas_call(
        kernel,
        out_shape=(jax.ShapeDtypeStruct((B, R, E), jnp.bfloat16),
                   jax.ShapeDtypeStruct((B, num_heads, R), jnp.float32)),
        grid=(B, SB),
        in_specs=[pl.BlockSpec((1, TS, E), lambda b, si: (b, si, 0)),
                  pl.BlockSpec((1, TS, E), lambda b, si: (b, si, 0)),
                  pl.BlockSpec((D, R), lambda b, si: (0, 0)),
                  pl.BlockSpec((1, R), lambda b, si: (0, 0))],
        out_specs=(pl.BlockSpec((1, R, E), lambda b, si: (b, 0, 0)),
                   pl.BlockSpec((1, num_heads, R), lambda b, si: (b, 0, 0))),
        scratch_shapes=[pltpu.VMEM((R, E), jnp.float32),
                        pltpu.VMEM((num_heads, R), jnp.float32)],
        compiler_params=pltpu.CompilerParams(
            dimension_semantics=("parallel", "arbitrary"),
            vmem_limit_bytes=_VMEM_LIMIT_BYTES),
    )(pf_k, pf_v, wf_bf16, bf)


# ---------------------------------------------------------------------------
# Kernel 2: fused hybrid attention per (batch, query-tile)
# ---------------------------------------------------------------------------

def _hybrid_attn_kernel(sp_q_ref, sp_k_ref, sp_v_ref, pf_q_ref, kv_ref, ksum_ref,
                        wf_ref, bf_ref, wo_sp_ref, bo_sp_ref, wo_pf_ref, bo_pf_ref,
                        gate_ref, o_ref, sp_acc, pf_acc,
                        *, num_heads, head_dim, topk, eps):
    f32 = jnp.float32
    bf16 = jnp.bfloat16

    sq = sp_q_ref[0]          # (TQ, E) bf16 (1/sqrt(D) folded into the weights)
    sk = sp_k_ref[0]          # (S,  E) bf16
    sv = sp_v_ref[0]          # (S,  E) bf16
    pq = pf_q_ref[0]          # (TQ, E) bf16
    kv = kv_ref[0]            # (R,  E) bf16
    ks_all = ksum_ref[0]      # (H,  R) f32
    wf = wf_ref[...]          # (D,  R) bf16
    bfm = bf_ref[...]         # (1,  R) f32 (hoisted out of the head loop)

    seq_kv = sk.shape[0]

    # Heads processed in pairs: the serial top-k max/select chains of two
    # independent heads interleave through the XLU/VALU slots. Each head's
    # (TQ, D) result goes straight into the (TQ, E) VMEM accumulators, bounding
    # vreg live ranges to one pair at a time (no concatenate).
    for h0 in range(0, num_heads, 2):
        hs = list(range(h0, min(h0 + 2, num_heads)))

        # ---- sparse branch: scores, approx top-k threshold, softmax, P.V ----
        s_list = []
        for h in hs:
            lo = h * head_dim
            qh = sq[:, lo:lo + head_dim]                              # (TQ, D)
            kh = sk[:, lo:lo + head_dim]                              # (S,  D)
            s_list.append(lax.dot_general(
                qh, kh, dimension_numbers=(((1,), (1,)), ((), ())),
                preferred_element_type=f32))                          # (TQ, S)

        if topk < seq_kv:
            # TODO(synk): threshold is the topk-th *distinct* row value (ties may
            # keep >k entries, unlike torch.topk); a counting/bisection threshold
            # would be preferable for large k.
            cur_list = list(s_list)
            for _ in range(topk - 1):
                cur_list = [jnp.where(c >= c.max(axis=-1, keepdims=True),
                                      -jnp.inf, c) for c in cur_list]
            s_list = [jnp.where(s >= c.max(axis=-1, keepdims=True), s, -jnp.inf)
                      for s, c in zip(s_list, cur_list)]

        for h, s in zip(hs, s_list):
            lo = h * head_dim
            vh = sv[:, lo:lo + head_dim]                              # (S, D)
            m = s.max(axis=-1, keepdims=True)
            p = jnp.exp(s - m)
            p = p * pl.reciprocal(p.sum(axis=-1, keepdims=True), approx=True)
            sp_acc[:, lo:lo + head_dim] = jnp.dot(
                p.astype(bf16), vh, preferred_element_type=f32)       # (TQ, D)

        # ---- performer branch: learned ReLU features, linear attention ----
        for h in hs:
            lo = h * head_dim
            qfh = pq[:, lo:lo + head_dim]                             # (TQ, D)
            qp = jnp.maximum(
                jnp.dot(qfh, wf, preferred_element_type=f32) + bfm, 0.0)  # (TQ, R)
            ksh = ks_all[h:h + 1, :]                                  # (1, R)
            denom = jnp.sum(qp * ksh, axis=-1, keepdims=True) + eps   # (TQ, 1)
            num = jnp.dot(qp.astype(bf16), kv[:, lo:lo + head_dim],
                          preferred_element_type=f32)                 # (TQ, D)
            pf_acc[:, lo:lo + head_dim] = num * pl.reciprocal(denom, approx=True)

    # ---- epilogue: output projections + gated mix, lane-dense (TQ, E) store ----
    sp_out = jnp.dot(sp_acc[...].astype(bf16), wo_sp_ref[...],
                     preferred_element_type=f32) + bo_sp_ref[...]
    pf_out = jnp.dot(pf_acc[...].astype(bf16), wo_pf_ref[...],
                     preferred_element_type=f32) + bo_pf_ref[...]

    b = pl.program_id(0)
    w_sp = gate_ref[b, 0]     # scalar reads from SMEM
    w_pf = gate_ref[b, 1]
    o_ref[0] = (w_sp * sp_out + w_pf * pf_out).astype(o_ref.dtype)


def hybrid_attention(sp_q, sp_k, sp_v, pf_q, kv, ksum, wf_bf16, bf,
                     wo_sp, bo_sp, wo_pf, bo_pf, gate, *,
                     num_heads, head_dim, topk, tq, eps=1e-6,
                     single_buffer_resident=True):
    B, S_pad, E = sp_q.shape
    S = sp_k.shape[1]
    D, R = wf_bf16.shape
    QB = S_pad // tq

    # Blocks whose index never changes across the query axis: single buffer
    # (no double-buffering) to reclaim VMEM — matters most on v7x's 64 MiB.
    if single_buffer_resident:
        def resident(shape, index_map):
            return pl.BlockSpec(shape, index_map,
                                pipeline_mode=pl.Buffered(buffer_count=1))
    else:
        def resident(shape, index_map):
            return pl.BlockSpec(shape, index_map)

    kernel = functools.partial(_hybrid_attn_kernel, num_heads=num_heads,
                               head_dim=head_dim, topk=topk, eps=eps)

    q_spec = pl.BlockSpec((1, tq, E), lambda b, qi: (b, qi, 0))

    # TODO(synk): for very long sequences (S*E*2B >> VMEM budget) the sparse
    # branch should add a KV grid axis with online softmax instead of keeping
    # full (1, S, E) K/V resident.
    return pl.pallas_call(
        kernel,
        out_shape=jax.ShapeDtypeStruct((B, S_pad, E), jnp.float32),
        grid=(B, QB),
        in_specs=[q_spec,                                              # sp_q
                  resident((1, S, E), lambda b, qi: (b, 0, 0)),        # sp_k
                  resident((1, S, E), lambda b, qi: (b, 0, 0)),        # sp_v
                  q_spec,                                              # pf_q
                  resident((1, R, E), lambda b, qi: (b, 0, 0)),        # kv (bf16)
                  resident((1, num_heads, R), lambda b, qi: (b, 0, 0)),# ksum
                  resident((D, R), lambda b, qi: (0, 0)),              # wf
                  resident((1, R), lambda b, qi: (0, 0)),              # bf
                  resident((E, E), lambda b, qi: (0, 0)),              # wo_sp
                  resident((1, E), lambda b, qi: (0, 0)),              # bo_sp
                  resident((E, E), lambda b, qi: (0, 0)),              # wo_pf
                  resident((1, E), lambda b, qi: (0, 0)),              # bo_pf
                  pl.BlockSpec(memory_space=pltpu.MemorySpace.SMEM)],  # gate (B,2)
        out_specs=q_spec,
        scratch_shapes=[pltpu.VMEM((tq, E), jnp.float32),   # sparse accumulator
                        pltpu.VMEM((tq, E), jnp.float32)],  # performer accumulator
        compiler_params=pltpu.CompilerParams(
            dimension_semantics=("parallel", "parallel"),
            vmem_limit_bytes=_VMEM_LIMIT_BYTES),
    )(sp_q, sp_k, sp_v, pf_q, kv, ksum, wf_bf16, bf, wo_sp, bo_sp, wo_pf, bo_pf, gate)


# ---------------------------------------------------------------------------
# Module wrapper (glue: fused QKV projection, gate logits, kernel dispatch)
# ---------------------------------------------------------------------------

class HybridThoughtAwareAttentionPallas:
    def __init__(self, embed_dim, num_heads, k=10, kernel_dim=256, dropout=0.1, seed=0):
        assert embed_dim % num_heads == 0
        self.embed_dim = embed_dim
        self.num_heads = num_heads
        self.head_dim = embed_dim // num_heads
        self.k = k
        self.kernel_dim = kernel_dim
        self.dropout = dropout  # TODO(synk): dropout is identity (eval mode); no stochastic drop.

        key = jax.random.PRNGKey(seed)
        keys = jax.random.split(key, 12)
        init = lambda kk, shape: (0.02 * jax.random.normal(kk, shape)).astype(jnp.float32)

        E, D, R = embed_dim, self.head_dim, kernel_dim
        scale = 1.0 / math.sqrt(D)
        # Fused QKV projection: [sp_q | sp_k | sp_v | pf_q | pf_k | pf_v], (E, 6E).
        # The 1/sqrt(D) query scale is folded into the sp_q columns (free at init;
        # removes one full (B,S,E) elementwise pass at runtime). If the sp_q bias
        # were nonzero it would be scaled identically.
        w_list = [init(keys[i], (E, E)) for i in range(6)]
        w_list[0] = w_list[0] * scale
        self.w_qkv = jnp.concatenate(w_list, axis=1)
        self.b_qkv = jnp.zeros((6 * E,), jnp.float32)
        # Output projections (stored bf16 for the MXU; biases f32).
        self.sp_wo = init(keys[6], (E, E)).astype(jnp.bfloat16)
        self.pf_wo = init(keys[7], (E, E)).astype(jnp.bfloat16)
        self.sp_bo = jnp.zeros((1, E), jnp.float32)
        self.pf_bo = jnp.zeros((1, E), jnp.float32)
        # Performer learned feature map (shared across heads).
        self.pf_wf = init(keys[8], (D, R)).astype(jnp.bfloat16)
        self.pf_bf = jnp.zeros((1, R), jnp.float32)
        # Gate.
        self.gate_w = init(keys[9], (E, 2))
        self.gate_b = jnp.zeros((2,), jnp.float32)

    def __call__(self, x, mask=None):
        # NOTE: `mask` is accepted but never forwarded to either branch, matching
        # the reference forward (sparse_attn(x) / performer_attn(x) receive no mask).
        B, S, E = x.shape
        H, D = self.num_heads, self.head_dim
        topk = min(self.k, S)

        # One fused (B,S,E) @ (E,6E) projection; heads stay packed in the E axis.
        qkv = x @ self.w_qkv + self.b_qkv
        sp_q, sp_k, sp_v, pf_q, pf_k, pf_v = jnp.split(qkv, 6, axis=-1)
        sp_q = sp_q.astype(jnp.bfloat16)
        sp_k = sp_k.astype(jnp.bfloat16)
        sp_v = sp_v.astype(jnp.bfloat16)
        pf_q = pf_q.astype(jnp.bfloat16)
        pf_k = pf_k.astype(jnp.bfloat16)
        pf_v = pf_v.astype(jnp.bfloat16)

        # Performer per-(b,h) KV summaries, streamed over S (Pallas kernel 1).
        kv, ksum = performer_kv_stats(pf_k, pf_v, self.pf_wf, self.pf_bf,
                                      num_heads=H, head_dim=D)

        # Gate logits are tiny -> plain JAX; the mix itself happens in the kernel.
        gate = jax.nn.softmax(jnp.mean(x, axis=1) @ self.gate_w + self.gate_b,
                              axis=-1).astype(jnp.float32)            # (B, 2)

        # Query tiling with padding so TQ never collapses to tiny divisors;
        # padded query rows produce garbage that is sliced off (K/V stay unpadded
        # so softmax / performer sums over keys are exact).
        TQ = _choose_query_tile(S, _TQ_TARGET)
        S_pad = _round_up(S, TQ)
        if S_pad != S:
            pad = ((0, 0), (0, S_pad - S), (0, 0))
            sp_q = jnp.pad(sp_q, pad)
            pf_q = jnp.pad(pf_q, pad)

        run = functools.partial(
            hybrid_attention, sp_q, sp_k, sp_v, pf_q, kv, ksum,
            self.pf_wf, self.pf_bf, self.sp_wo, self.sp_bo,
            self.pf_wo, self.pf_bo, gate,
            num_heads=H, head_dim=D, topk=topk, tq=TQ)
        try:
            out = run(single_buffer_resident=True)
        except Exception:
            # Fallback for Pallas builds without BlockSpec pipeline_mode support.
            out = run(single_buffer_resident=False)

        if S_pad != S:
            out = out[:, :S, :]
        return out  # dropout == identity in eval mode


# ---------------------------------------------------------------------------
# Demo
# ---------------------------------------------------------------------------

if __name__ == "__main__":
    B, S, E, H = 2, 8, 32, 4
    module = HybridThoughtAwareAttentionPallas(embed_dim=E, num_heads=H,
                                               k=4, kernel_dim=16, seed=0)
    x = jax.random.normal(jax.random.PRNGKey(0), (B, S, E), dtype=jnp.float32)
    out = module(x)
    out = jax.block_until_ready(out)
    assert out.shape == (B, S, E) and out.dtype == jnp.float32
    assert bool(jnp.all(jnp.isfinite(out)))
    print("KERNEL_OK")
</pallas_src>

<mosaic_0001>
module attributes {stable_mosaic.version = 11 : i64} {
  func.func @_performer_kv_stats_kernel(%arg0: i32, %arg1: i32, %arg2: memref<1x8x32xbf16, #tpu.memory_space<vmem>>, %arg3: memref<1x8x32xbf16, #tpu.memory_space<vmem>>, %arg4: memref<8x16xbf16, #tpu.memory_space<vmem>>, %arg5: memref<1x16xf32, #tpu.memory_space<vmem>>, %arg6: memref<1x16x32xbf16, #tpu.memory_space<vmem>>, %arg7: memref<1x4x16xf32, #tpu.memory_space<vmem>>, %arg8: memref<16x32xf32, #tpu.memory_space<vmem>>, %arg9: memref<4x16xf32, #tpu.memory_space<vmem>>) attributes {dimension_semantics = [#tpu.dimension_semantics<parallel>, #tpu.dimension_semantics<arbitrary>], iteration_bounds = array<i64: 2, 1>, scalar_prefetch = 0 : i64, scratch_operands = 2 : i64, tpu.core_type = #tpu.core_type<tc>, window_params = [{transform_indices = @transform_0, window_bounds = array<i64: 1, 8, 32>}, {transform_indices = @transform_1, window_bounds = array<i64: 1, 8, 32>}, {pipeline_mode = #tpu.pipeline_mode<synchronous>, transform_indices = @transform_2, window_bounds = array<i64: 8, 16>}, {pipeline_mode = #tpu.pipeline_mode<synchronous>, transform_indices = @transform_3, window_bounds = array<i64: 1, 16>}, {transform_indices = @transform_4, window_bounds = array<i64: 1, 16, 32>}, {transform_indices = @transform_5, window_bounds = array<i64: 1, 4, 16>}]} {
    %c0_i32 = arith.constant 0 : i32
    %0 = arith.cmpi eq, %arg1, %c0_i32 : i32
    %1 = arith.extui %0 : i1 to i32
    %c0_i32_0 = arith.constant 0 : i32
    %2 = arith.cmpi ne, %1, %c0_i32_0 : i32
    scf.if %2 {
      %cst_53 = arith.constant 0.000000e+00 : f32
      %80 = vector.broadcast %cst_53 : f32 to vector<16x32xf32>
      %c0_54 = arith.constant 0 : index
      %c0_55 = arith.constant 0 : index
      %81 = vector.load %arg8[%c0_54, %c0_55] : memref<16x32xf32, #tpu.memory_space<vmem>>, vector<16x32xf32>
      tpu.vector_store %arg8[%c0_54, %c0_55], %80 {strides = array<i32>} : memref<16x32xf32, #tpu.memory_space<vmem>>, vector<16x32xf32>,
      %cst_56 = arith.constant 0.000000e+00 : f32
      %82 = vector.broadcast %cst_56 : f32 to vector<4x16xf32>
      %c0_57 = arith.constant 0 : index
      %c0_58 = arith.constant 0 : index
      %83 = vector.load %arg9[%c0_57, %c0_58] : memref<4x16xf32, #tpu.memory_space<vmem>>, vector<4x16xf32>
      tpu.vector_store %arg9[%c0_57, %c0_58], %82 {strides = array<i32>} : memref<4x16xf32, #tpu.memory_space<vmem>>, vector<4x16xf32>,
    } else {
    }
    %c0 = arith.constant 0 : index
    %c0_1 = arith.constant 0 : index
    %c0_2 = arith.constant 0 : index
    %3 = vector.load %arg2[%c0, %c0_1, %c0_2] : memref<1x8x32xbf16, #tpu.memory_space<vmem>>, vector<1x8x32xbf16>
    %4 = vector.shape_cast %3 : vector<1x8x32xbf16> to vector<8x32xbf16>
    %c0_3 = arith.constant 0 : index
    %c0_4 = arith.constant 0 : index
    %c0_5 = arith.constant 0 : index
    %5 = vector.load %arg3[%c0_3, %c0_4, %c0_5] : memref<1x8x32xbf16, #tpu.memory_space<vmem>>, vector<1x8x32xbf16>
    %6 = vector.shape_cast %5 : vector<1x8x32xbf16> to vector<8x32xbf16>
    %c0_6 = arith.constant 0 : index
    %c0_7 = arith.constant 0 : index
    %7 = vector.load %arg4[%c0_6, %c0_7] : memref<8x16xbf16, #tpu.memory_space<vmem>>, vector<8x16xbf16>
    %c0_8 = arith.constant 0 : index
    %c0_9 = arith.constant 0 : index
    %8 = vector.load %arg5[%c0_8, %c0_9] : memref<1x16xf32, #tpu.memory_space<vmem>>, vector<1x16xf32>
    %9 = vector.extract_strided_slice %4 {offsets = [0, 0], sizes = [8, 8], strides = [1, 1]} : vector<8x32xbf16> to vector<8x8xbf16>
    %10 = vector.extract_strided_slice %6 {offsets = [0, 0], sizes = [8, 8], strides = [1, 1]} : vector<8x32xbf16> to vector<8x8xbf16>
    %cst = arith.constant dense<0.000000e+00> : vector<8x16xf32>
    %11 = tpu.matmul %9, %7, %cst {dimension_numbers = #tpu.dot_dimension_numbers<[1], [0], [0], [1], [0, 0, 1, 1], [], []>} : vector<8x8xbf16>, vector<8x16xbf16>, vector<8x16xf32> -> vector<8x16xf32>
    %12 = vector.broadcast %8 : vector<1x16xf32> to vector<8x16xf32>
    %13 = arith.addf %11, %12 : vector<8x16xf32>
    %cst_10 = arith.constant 0.000000e+00 : f32
    %14 = vector.broadcast %cst_10 : f32 to vector<8x16xf32>
    %15 = arith.maximumf %13, %14 : vector<8x16xf32>
    %16 = arith.truncf %15 : vector<8x16xf32> to vector<8x16xbf16>
    %cst_11 = arith.constant dense<0.000000e+00> : vector<16x8xf32>
    %17 = tpu.matmul %16, %10, %cst_11 {dimension_numbers = #tpu.dot_dimension_numbers<[0], [0], [1], [1], [0, 1, 1, 1], [], []>} : vector<8x16xbf16>, vector<8x8xbf16>, vector<16x8xf32> -> vector<16x8xf32>
    %c0_12 = arith.constant 0 : index
    %c0_13 = arith.constant 0 : index
    %18 = vector.load %arg8[%c0_12, %c0_13] : memref<16x32xf32, #tpu.memory_space<vmem>>, vector<16x8xf32>
    %19 = arith.addf %18, %17 : vector<16x8xf32>
    %c0_14 = arith.constant 0 : index
    %c0_15 = arith.constant 0 : index
    %20 = vector.load %arg8[%c0_14, %c0_15] : memref<16x32xf32, #tpu.memory_space<vmem>>, vector<16x8xf32>
    tpu.vector_store %arg8[%c0_14, %c0_15], %19 {strides = array<i32>} : memref<16x32xf32, #tpu.memory_space<vmem>>, vector<16x8xf32>,
    %c0_16 = arith.constant 0 : index
    %c0_17 = arith.constant 0 : index
    %21 = vector.load %arg9[%c0_16, %c0_17] : memref<4x16xf32, #tpu.memory_space<vmem>>, vector<1x16xf32>
    %cst_18 = arith.constant dense<0.000000e+00> : vector<16xf32>
    %22 = vector.multi_reduction <add>, %15, %cst_18 [0] : vector<8x16xf32> to vector<16xf32>
    %23 = vector.shape_cast %22 : vector<16xf32> to vector<1x16xf32>
    %24 = arith.addf %21, %23 : vector<1x16xf32>
    %c0_19 = arith.constant 0 : index
    %c0_20 = arith.constant 0 : index
    %25 = vector.load %arg9[%c0_19, %c0_20] : memref<4x16xf32, #tpu.memory_space<vmem>>, vector<1x16xf32>
    tpu.vector_store %arg9[%c0_19, %c0_20], %24 {strides = array<i32>} : memref<4x16xf32, #tpu.memory_space<vmem>>, vector<1x16xf32>,
    %26 = vector.extract_strided_slice %4 {offsets = [0, 8], sizes = [8, 8], strides = [1, 1]} : vector<8x32xbf16> to vector<8x8xbf16>
    %27 = vector.extract_strided_slice %6 {offsets = [0, 8], sizes = [8, 8], strides = [1, 1]} : vector<8x32xbf16> to vector<8x8xbf16>
    %cst_21 = arith.constant dense<0.000000e+00> : vector<8x16xf32>
    %28 = tpu.matmul %26, %7, %cst_21 {dimension_numbers = #tpu.dot_dimension_numbers<[1], [0], [0], [1], [0, 0, 1, 1], [], []>} : vector<8x8xbf16>, vector<8x16xbf16>, vector<8x16xf32> -> vector<8x16xf32>
    %29 = vector.broadcast %8 : vector<1x16xf32> to vector<8x16xf32>
    %30 = arith.addf %28, %29 : vector<8x16xf32>
    %cst_22 = arith.constant 0.000000e+00 : f32
    %31 = vector.broadcast %cst_22 : f32 to vector<8x16xf32>
    %32 = arith.maximumf %30, %31 : vector<8x16xf32>
    %33 = arith.truncf %32 : vector<8x16xf32> to vector<8x16xbf16>
    %cst_23 = arith.constant dense<0.000000e+00> : vector<16x8xf32>
    %34 = tpu.matmul %33, %27, %cst_23 {dimension_numbers = #tpu.dot_dimension_numbers<[0], [0], [1], [1], [0, 1, 1, 1], [], []>} : vector<8x16xbf16>, vector<8x8xbf16>, vector<16x8xf32> -> vector<16x8xf32>
    %c0_24 = arith.constant 0 : index
    %c8 = arith.constant 8 : index
    %35 = vector.load %arg8[%c0_24, %c8] : memref<16x32xf32, #tpu.memory_space<vmem>>, vector<16x8xf32>
    %36 = arith.addf %35, %34 : vector<16x8xf32>
    %c0_25 = arith.constant 0 : index
    %c8_26 = arith.constant 8 : index
    %37 = vector.load %arg8[%c0_25, %c8_26] : memref<16x32xf32, #tpu.memory_space<vmem>>, vector<16x8xf32>
    tpu.vector_store %arg8[%c0_25, %c8_26], %36 {strides = array<i32>} : memref<16x32xf32, #tpu.memory_space<vmem>>, vector<16x8xf32>,
    %c1 = arith.constant 1 : index
    %c0_27 = arith.constant 0 : index
    %38 = vector.load %arg9[%c1, %c0_27] : memref<4x16xf32, #tpu.memory_space<vmem>>, vector<1x16xf32>
    %cst_28 = arith.constant dense<0.000000e+00> : vector<16xf32>
    %39 = vector.multi_reduction <add>, %32, %cst_28 [0] : vector<8x16xf32> to vector<16xf32>
    %40 = vector.shape_cast %39 : vector<16xf32> to vector<1x16xf32>
    %41 = arith.addf %38, %40 : vector<1x16xf32>
    %c1_29 = arith.constant 1 : index
    %c0_30 = arith.constant 0 : index
    %42 = vector.load %arg9[%c1_29, %c0_30] : memref<4x16xf32, #tpu.memory_space<vmem>>, vector<1x16xf32>
    tpu.vector_store %arg9[%c1_29, %c0_30], %41 {strides = array<i32>} : memref<4x16xf32, #tpu.memory_space<vmem>>, vector<1x16xf32>,
    %43 = vector.extract_strided_slice %4 {offsets = [0, 16], sizes = [8, 8], strides = [1, 1]} : vector<8x32xbf16> to vector<8x8xbf16>
    %44 = vector.extract_strided_slice %6 {offsets = [0, 16], sizes = [8, 8], strides = [1, 1]} : vector<8x32xbf16> to vector<8x8xbf16>
    %cst_31 = arith.constant dense<0.000000e+00> : vector<8x16xf32>
    %45 = tpu.matmul %43, %7, %cst_31 {dimension_numbers = #tpu.dot_dimension_numbers<[1], [0], [0], [1], [0, 0, 1, 1], [], []>} : vector<8x8xbf16>, vector<8x16xbf16>, vector<8x16xf32> -> vector<8x16xf32>
    %46 = vector.broadcast %8 : vector<1x16xf32> to vector<8x16xf32>
    %47 = arith.addf %45, %46 : vector<8x16xf32>
    %cst_32 = arith.constant 0.000000e+00 : f32
    %48 = vector.broadcast %cst_32 : f32 to vector<8x16xf32>
    %49 = arith.maximumf %47, %48 : vector<8x16xf32>
    %50 = arith.truncf %49 : vector<8x16xf32> to vector<8x16xbf16>
    %cst_33 = arith.constant dense<0.000000e+00> : vector<16x8xf32>
    %51 = tpu.matmul %50, %44, %cst_33 {dimension_numbers = #tpu.dot_dimension_numbers<[0], [0], [1], [1], [0, 1, 1, 1], [], []>} : vector<8x16xbf16>, vector<8x8xbf16>, vector<16x8xf32> -> vector<16x8xf32>
    %c0_34 = arith.constant 0 : index
    %c16 = arith.constant 16 : index
    %52 = vector.load %arg8[%c0_34, %c16] : memref<16x32xf32, #tpu.memory_space<vmem>>, vector<16x8xf32>
    %53 = arith.addf %52, %51 : vector<16x8xf32>
    %c0_35 = arith.constant 0 : index
    %c16_36 = arith.constant 16 : index
    %54 = vector.load %arg8[%c0_35, %c16_36] : memref<16x32xf32, #tpu.memory_space<vmem>>, vector<16x8xf32>
    tpu.vector_store %arg8[%c0_35, %c16_36], %53 {strides = array<i32>} : memref<16x32xf32, #tpu.memory_space<vmem>>, vector<16x8xf32>,
    %c2 = arith.constant 2 : index
    %c0_37 = arith.constant 0 : index
    %55 = vector.load %arg9[%c2, %c0_37] : memref<4x16xf32, #tpu.memory_space<vmem>>, vector<1x16xf32>
    %cst_38 = arith.constant dense<0.000000e+00> : vector<16xf32>
    %56 = vector.multi_reduction <add>, %49, %cst_38 [0] : vector<8x16xf32> to vector<16xf32>
    %57 = vector.shape_cast %56 : vector<16xf32> to vector<1x16xf32>
    %58 = arith.addf %55, %57 : vector<1x16xf32>
    %c2_39 = arith.constant 2 : index
    %c0_40 = arith.constant 0 : index
    %59 = vector.load %arg9[%c2_39, %c0_40] : memref<4x16xf32, #tpu.memory_space<vmem>>, vector<1x16xf32>
    tpu.vector_store %arg9[%c2_39, %c0_40], %58 {strides = array<i32>} : memref<4x16xf32, #tpu.memory_space<vmem>>, vector<1x16xf32>,
    %60 = vector.extract_strided_slice %4 {offsets = [0, 24], sizes = [8, 8], strides = [1, 1]} : vector<8x32xbf16> to vector<8x8xbf16>
    %61 = vector.extract_strided_slice %6 {offsets = [0, 24], sizes = [8, 8], strides = [1, 1]} : vector<8x32xbf16> to vector<8x8xbf16>
    %cst_41 = arith.constant dense<0.000000e+00> : vector<8x16xf32>
    %62 = tpu.matmul %60, %7, %cst_41 {dimension_numbers = #tpu.dot_dimension_numbers<[1], [0], [0], [1], [0, 0, 1, 1], [], []>} : vector<8x8xbf16>, vector<8x16xbf16>, vector<8x16xf32> -> vector<8x16xf32>
    %63 = vector.broadcast %8 : vector<1x16xf32> to vector<8x16xf32>
    %64 = arith.addf %62, %63 : vector<8x16xf32>
    %cst_42 = arith.constant 0.000000e+00 : f32
    %65 = vector.broadcast %cst_42 : f32 to vector<8x16xf32>
    %66 = arith.maximumf %64, %65 : vector<8x16xf32>
    %67 = arith.truncf %66 : vector<8x16xf32> to vector<8x16xbf16>
    %cst_43 = arith.constant dense<0.000000e+00> : vector<16x8xf32>
    %68 = tpu.matmul %67, %61, %cst_43 {dimension_numbers = #tpu.dot_dimension_numbers<[0], [0], [1], [1], [0, 1, 1, 1], [], []>} : vector<8x16xbf16>, vector<8x8xbf16>, vector<16x8xf32> -> vector<16x8xf32>
    %c0_44 = arith.constant 0 : index
    %c24 = arith.constant 24 : index
    %69 = vector.load %arg8[%c0_44, %c24] : memref<16x32xf32, #tpu.memory_space<vmem>>, vector<16x8xf32>
    %70 = arith.addf %69, %68 : vector<16x8xf32>
    %c0_45 = arith.constant 0 : index
    %c24_46 = arith.constant 24 : index
    %71 = vector.load %arg8[%c0_45, %c24_46] : memref<16x32xf32, #tpu.memory_space<vmem>>, vector<16x8xf32>
    tpu.vector_store %arg8[%c0_45, %c24_46], %70 {strides = array<i32>} : memref<16x32xf32, #tpu.memory_space<vmem>>, vector<16x8xf32>,
    %c3 = arith.constant 3 : index
    %c0_47 = arith.constant 0 : index
    %72 = vector.load %arg9[%c3, %c0_47] : memref<4x16xf32, #tpu.memory_space<vmem>>, vector<1x16xf32>
    %cst_48 = arith.constant dense<0.000000e+00> : vector<16xf32>
    %73 = vector.multi_reduction <add>, %66, %cst_48 [0] : vector<8x16xf32> to vector<16xf32>
    %74 = vector.shape_cast %73 : vector<16xf32> to vector<1x16xf32>
    %75 = arith.addf %72, %74 : vector<1x16xf32>
    %c3_49 = arith.constant 3 : index
    %c0_50 = arith.constant 0 : index
    %76 = vector.load %arg9[%c3_49, %c0_50] : memref<4x16xf32, #tpu.memory_space<vmem>>, vector<1x16xf32>
    tpu.vector_store %arg9[%c3_49, %c0_50], %75 {strides = array<i32>} : memref<4x16xf32, #tpu.memory_space<vmem>>, vector<1x16xf32>,
    %c0_i32_51 = arith.constant 0 : i32
    %77 = arith.cmpi eq, %arg1, %c0_i32_51 : i32
    %78 = arith.extui %77 : i1 to i32
    %c0_i32_52 = arith.constant 0 : i32
    %79 = arith.cmpi ne, %78, %c0_i32_52 : i32
    scf.if %79 {
      %c0_53 = arith.constant 0 : index
      %c0_54 = arith.constant 0 : index
      %80 = vector.load %arg8[%c0_53, %c0_54] : memref<16x32xf32, #tpu.memory_space<vmem>>, vector<16x32xf32>
      %81 = arith.truncf %80 : vector<16x32xf32> to vector<16x32xbf16>
      %c0_55 = arith.constant 0 : index
      %c0_56 = arith.constant 0 : index
      %c0_57 = arith.constant 0 : index
      %82 = vector.load %arg6[%c0_55, %c0_56, %c0_57] : memref<1x16x32xbf16, #tpu.memory_space<vmem>>, vector<1x16x32xbf16>
      %83 = vector.shape_cast %82 : vector<1x16x32xbf16> to vector<16x32xbf16>
      %84 = vector.shape_cast %81 : vector<16x32xbf16> to vector<1x16x32xbf16>
      tpu.vector_store %arg6[%c0_55, %c0_56, %c0_57], %84 {strides = array<i32>} : memref<1x16x32xbf16, #tpu.memory_space<vmem>>, vector<1x16x32xbf16>,
      %c0_58 = arith.constant 0 : index
      %c0_59 = arith.constant 0 : index
      %85 = vector.load %arg9[%c0_58, %c0_59] : memref<4x16xf32, #tpu.memory_space<vmem>>, vector<4x16xf32>
      %c0_60 = arith.constant 0 : index
      %c0_61 = arith.constant 0 : index
      %c0_62 = arith.constant 0 : index
      %86 = vector.load %arg7[%c0_60, %c0_61, %c0_62] : memref<1x4x16xf32, #tpu.memory_space<vmem>>, vector<1x4x16xf32>
      %87 = vector.shape_cast %86 : vector<1x4x16xf32> to vector<4x16xf32>
      %88 = vector.shape_cast %85 : vector<4x16xf32> to vector<1x4x16xf32>
      tpu.vector_store %arg7[%c0_60, %c0_61, %c0_62], %88 {strides = array<i32>} : memref<1x4x16xf32, #tpu.memory_space<vmem>>, vector<1x4x16xf32>,
    } else {
    }
    return
  }
  func.func @transform_0(%arg0: i32, %arg1: i32) -> (i32, i32, i32) {
    %c0_i32 = arith.constant 0 : i32
    %c0_i32_0 = arith.constant 0 : i32
    return %arg0, %arg1, %c0_i32 : i32, i32, i32
  }
  func.func @transform_1(%arg0: i32, %arg1: i32) -> (i32, i32, i32) {
    %c0_i32 = arith.constant 0 : i32
    %c0_i32_0 = arith.constant 0 : i32
    return %arg0, %arg1, %c0_i32 : i32, i32, i32
  }
  func.func @transform_2(%arg0: i32, %arg1: i32) -> (i32, i32) {
    %c0_i32 = arith.constant 0 : i32
    %c0_i32_0 = arith.constant 0 : i32
    %c0_i32_1 = arith.constant 0 : i32
    return %c0_i32, %c0_i32_0 : i32, i32
  }
  func.func @transform_3(%arg0: i32, %arg1: i32) -> (i32, i32) {
    %c0_i32 = arith.constant 0 : i32
    %c0_i32_0 = arith.constant 0 : i32
    %c0_i32_1 = arith.constant 0 : i32
    return %c0_i32, %c0_i32_0 : i32, i32
  }
  func.func @transform_4(%arg0: i32, %arg1: i32) -> (i32, i32, i32) {
    %c0_i32 = arith.constant 0 : i32
    %c0_i32_0 = arith.constant 0 : i32
    %c0_i32_1 = arith.constant 0 : i32
    return %arg0, %c0_i32, %c0_i32_0 : i32, i32, i32
  }
  func.func @transform_5(%arg0: i32, %arg1: i32) -> (i32, i32, i32) {
    %c0_i32 = arith.constant 0 : i32
    %c0_i32_0 = arith.constant 0 : i32
    %c0_i32_1 = arith.constant 0 : i32
    return %arg0, %c0_i32, %c0_i32_0 : i32, i32, i32
  }
}

</mosaic_0001>

<llo_original>
// kernel: tpu_custom_call.1
$region0: #{tpu_custom_call.1}
  #allocation0 [shape = 'u32[]', space=smem, size = 0x4, offset = 0x4, fixed_abs, tag = 'smem constant byte address 0x4 - core index']
  #allocation1 [shape = 'u32[144,128]{1,0:T(1,128)}', space=vmem, size = 0x12000, scoped, tag = 'internal scratch']
  #allocation2 [shape = 'f32[16,32]{1,0:T(8,128)}', space=vmem, size = 0x2000, scoped, tag = 'scratch operand']
  #allocation3 [shape = 'f32[4,16]{1,0:T(4,128)}', space=vmem, size = 0x800, scoped, tag = 'scratch operand']
  %s0 = inlined_call_operand.hbm [shape: bf16[2,8,32], index: 0, kind: input, shape index: {}]
  %s1 = inlined_call_operand.hbm [shape: bf16[2,8,32], index: 1, kind: input, shape index: {}]
  %s2 = inlined_call_operand.vmem [shape: bf16[8,16], index: 2, kind: input, shape index: {}]
  %s3 = inlined_call_operand.vmem [shape: f32[1,16], index: 3, kind: input, shape index: {}]
  %s4 = inlined_call_operand.hbm [shape: bf16[2,16,32], index: 4, kind: output, shape index: {0}]
  %s5 = inlined_call_operand.hbm [shape: f32[2,4,16], index: 5, kind: output, shape index: {1}]
  %6 = xla_tuple %s4, %s5
  %s7 = sld [smem:[#allocation0]]
  $region73: #{tpu_custom_call.1} parent=0
    _
  %s9 = ssub.s32 1, %s7
  %s10 = scalar_select 0, %s9, %s7
  $region1: #{tpu_custom_call.1} parent=0
    #allocation4 [shape = 'u8[4096]{0}', space=vmem, size = 0x1000, scoped, tag = 'input window, operand 0']
    #allocation5 [shape = 's32[2]{0}', space=sflag, size = 0x8, scoped, tag = 'scoped memory for tpu_custom_call.1']
    #allocation6 [shape = 's32[2]{0}', space=sflag, size = 0x8, scoped, tag = 'scoped memory for tpu_custom_call.1']
    #allocation7 [shape = 'u8[4096]{0}', space=vmem, size = 0x1000, scoped, tag = 'input window, operand 1']
    #allocation8 [shape = 's32[2]{0}', space=sflag, size = 0x8, scoped, tag = 'scoped memory for tpu_custom_call.1']
    #allocation9 [shape = 'u8[8192]{0}', space=vmem, size = 0x2000, scoped, tag = 'output window, operand 0']
    #allocation10 [shape = 'u8[4096]{0}', space=vmem, size = 0x1000, scoped, tag = 'output window, operand 1']
    #allocation11 [shape = 's32[2]{0}', space=sflag, size = 0x8, scoped, tag = 'scoped memory for tpu_custom_call.1']
    %11 = vsyncpa [#allocation5], 0
    %s12 = scalar_lea.sflag [#allocation5], 1
    %13 = vsyncpa %s12, 0
    %14 = vsyncpa [#allocation8], 0
    %s15 = scalar_lea.sflag [#allocation8], 1
    %16 = vsyncpa %s15, 0
    %17 = vsyncpa [#allocation6], 0
    %s18 = scalar_lea.sflag [#allocation6], 1
    %19 = vsyncpa %s18, 0
    %20 = vsyncpa [#allocation11], 0
    %s21 = scalar_lea.sflag [#allocation11], 1
    %22 = vsyncpa %s21, 0
    loop: start=0, step=1, limit=4
    $region2: #{tpu_custom_call.1} parent=1 // loop_pre_header
      _
    $region3: #{tpu_custom_call.1} parent=1 // loop_header
      %s24 = sphi 0, %s28
      %p25 = scmp.ge.s32.totalorder %s24, 4
      %s31 = sphi 0, %s43
      %s32 = sphi 0, %s39
      %s33 = sphi 0, %s31
      %s34 = sphi 0, %s32
      %s35 = sphi 0, %s33
      %s36 = sphi 0, %s34
      %s48 = sphi 0, %s50
      %s51 = sphi 0, %s48
      %s52 = sphi 0, %s51
      %s68 = sphi 0, %s52
      %s76 = sphi 0, %s78
      %s79 = sphi 0, %s76
      %s80 = sphi 0, %s79
      %s96 = sphi 0, %s80
      %s100 = sphi 0, %s100
      %s102 = sphi 0, %s100
      %s103 = sphi 0, %s102
      %s117 = sphi 0, %s103
      %s121 = sphi 0, %s121
      %s123 = sphi 0, %s121
      %s124 = sphi 0, %s123
      %s138 = sphi 0, %s124
      %s144 = sphi 0, %s146
      %s147 = sphi 0, %s144
      %s148 = sphi 0, %s147
      %s164 = sphi 0, %s148
      %s170 = sphi 0, %s172
      %s173 = sphi 0, %s170
      %s174 = sphi 0, %s173
      %s190 = sphi 0, %s174
    $region4: #{tpu_custom_call.1} parent=1 // loop_header_branch
      %27 = sbr.rel (%p25) target = $region8
    $region5: #{tpu_custom_call.1} parent=1 // loop_body
      %s29 = ssub.s32 %s24, 1
      %s30 = ssub.s32 %s24, 2
      %s37 = sadd.s32 1, %s32
      %p38 = scmp.ge.s32.totalorder %s37, 1
      %s39 = scalar_select %p38, 0, %s37
      %s40 = sadd.s32 1, %s31
      %s41 = scalar_select %p38, %s40, %s31
      %p42 = scmp.ge.s32.totalorder %s41, 2
      %s43 = scalar_select %p42, 0, %s41
      %s44 = ssub.s32 %s31, %s43
      %s45 = ssub.s32 %s32, %s39
      %s46 = sor.u32 %s44, %s45
      %p47 = scmp.eq.s32.totalorder %s46, 0
      %s49 = sadd.s32 %s48, 1
      %s50 = scalar_select %p47, %s48, %s49
      %p53 = pneg %p47
      %p54 = scmp.eq.s32.totalorder %s24, 1
      %p55 = por %p53, %p54
      %p56 = scmp.ne.s32.totalorder %s48, %s51
      %p57 = scmp.eq.s32.totalorder %s24, 0
      %p58 = por %p56, %p57
      %p59 = scmp.ne.s32.totalorder %s48, %s51
      %p60 = scmp.eq.s32.totalorder %s29, 1
      %p61 = por %p59, %p60
      %p62 = scmp.ne.s32.totalorder %s51, %s52
      %p63 = scmp.eq.s32.totalorder %s29, 0
      %p64 = por %p62, %p63
      %p65 = scmp.ne.s32.totalorder %s51, %s52
      %p66 = scmp.eq.s32.totalorder %s30, 1
      %p67 = por %p65, %p66
      %p69 = scmp.ne.s32.totalorder %s52, %s68
      %p70 = scmp.eq.s32.totalorder %s30, 0
      %p71 = por %p69, %p70
      %s72 = ssub.s32 %s31, %s43
      %s73 = ssub.s32 %s32, %s39
      %s74 = sor.u32 %s72, %s73
      %p75 = scmp.eq.s32.totalorder %s74, 0
      %s77 = sadd.s32 %s76, 1
      %s78 = scalar_select %p75, %s76, %s77
      %p81 = pneg %p75
      %p82 = scmp.eq.s32.totalorder %s24, 1
      %p83 = por %p81, %p82
      %p84 = scmp.ne.s32.totalorder %s76, %s79
      %p85 = scmp.eq.s32.totalorder %s24, 0
      %p86 = por %p84, %p85
      %p87 = scmp.ne.s32.totalorder %s76, %s79
      %p88 = scmp.eq.s32.totalorder %s29, 1
      %p89 = por %p87, %p88
      %p90 = scmp.ne.s32.totalorder %s79, %s80
      %p91 = scmp.eq.s32.totalorder %s29, 0
      %p92 = por %p90, %p91
      %p93 = scmp.ne.s32.totalorder %s79, %s80
      %p94 = scmp.eq.s32.totalorder %s30, 1
      %p95 = por %p93, %p94
      %p97 = scmp.ne.s32.totalorder %s80, %s96
      %p98 = scmp.eq.s32.totalorder %s30, 0
      %p99 = por %p97, %p98
      %s101 = sadd.s32 %s100, 1
      %p104 = scmp.eq.s32.totalorder %s24, 1
      %p105 = scmp.ne.s32.totalorder %s100, %s102
      %p106 = scmp.eq.s32.totalorder %s24, 0
      %p107 = por %p105, %p106
      %p108 = scmp.ne.s32.totalorder %s100, %s102
      %p109 = scmp.eq.s32.totalorder %s29, 1
      %p110 = por %p108, %p109
      %p111 = scmp.ne.s32.totalorder %s102, %s103
      %p112 = scmp.eq.s32.totalorder %s29, 0
      %p113 = por %p111, %p112
      %p114 = scmp.ne.s32.totalorder %s102, %s103
      %p115 = scmp.eq.s32.totalorder %s30, 1
      %p116 = por %p114, %p115
      %p118 = scmp.ne.s32.totalorder %s103, %s117
      %p119 = scmp.eq.s32.totalorder %s30, 0
      %p120 = por %p118, %p119
      %s122 = sadd.s32 %s121, 1
      %p125 = scmp.eq.s32.totalorder %s24, 1
      %p126 = scmp.ne.s32.totalorder %s121, %s123
      %p127 = scmp.eq.s32.totalorder %s24, 0
      %p128 = por %p126, %p127
      %p129 = scmp.ne.s32.totalorder %s121, %s123
      %p130 = scmp.eq.s32.totalorder %s29, 1
      %p131 = por %p129, %p130
      %p132 = scmp.ne.s32.totalorder %s123, %s124
      %p133 = scmp.eq.s32.totalorder %s29, 0
      %p134 = por %p132, %p133
      %p135 = scmp.ne.s32.totalorder %s123, %s124
      %p136 = scmp.eq.s32.totalorder %s30, 1
      %p137 = por %p135, %p136
      %p139 = scmp.ne.s32.totalorder %s124, %s138
      %p140 = scmp.eq.s32.totalorder %s30, 0
      %p141 = por %p139, %p140
      %s142 = ssub.s32 %s31, %s43
      %p143 = scmp.eq.s32.totalorder %s142, 0
      %s145 = sadd.s32 %s144, 1
      %s146 = scalar_select %p143, %s144, %s145
      %p149 = pneg %p143
      %p150 = scmp.eq.s32.totalorder %s24, 1
      %p151 = por %p149, %p150
      %p152 = scmp.ne.s32.totalorder %s144, %s147
      %p153 = scmp.eq.s32.totalorder %s24, 0
      %p154 = por %p152, %p153
      %p155 = scmp.ne.s32.totalorder %s144, %s147
      %p156 = scmp.eq.s32.totalorder %s29, 1
      %p157 = por %p155, %p156
      %p158 = scmp.ne.s32.totalorder %s147, %s148
      %p159 = scmp.eq.s32.totalorder %s29, 0
      %p160 = por %p158, %p159
      %p161 = scmp.ne.s32.totalorder %s147, %s148
      %p162 = scmp.eq.s32.totalorder %s30, 1
      %p163 = por %p161, %p162
      %p165 = scmp.ne.s32.totalorder %s148, %s164
      %p166 = scmp.eq.s32.totalorder %s30, 0
      %p167 = por %p165, %p166
      %s168 = ssub.s32 %s31, %s43
      %p169 = scmp.eq.s32.totalorder %s168, 0
      %s171 = sadd.s32 %s170, 1
      %s172 = scalar_select %p169, %s170, %s171
      %p175 = pneg %p169
      %p176 = scmp.eq.s32.totalorder %s24, 1
      %p177 = por %p175, %p176
      %p178 = scmp.ne.s32.totalorder %s170, %s173
      %p179 = scmp.eq.s32.totalorder %s24, 0
      %p180 = por %p178, %p179
      %p181 = scmp.ne.s32.totalorder %s170, %s173
      %p182 = scmp.eq.s32.totalorder %s29, 1
      %p183 = por %p181, %p182
      %p184 = scmp.ne.s32.totalorder %s173, %s174
      %p185 = scmp.eq.s32.totalorder %s29, 0
      %p186 = por %p184, %p185
      %p187 = scmp.ne.s32.totalorder %s173, %s174
      %p188 = scmp.eq.s32.totalorder %s30, 1
      %p189 = por %p187, %p188
      %p191 = scmp.ne.s32.totalorder %s174, %s190
      %p192 = scmp.eq.s32.totalorder %s30, 0
      %p193 = por %p191, %p192
      %p194 = scmp.le.s32.totalorder 1, %s24
      %p195 = scmp.lt.s32.totalorder %s24, 3
      %p196 = pnand %p194, %p195
      %p197 = pneg %p196
      // Predicated region
      $region9: #{tpu_custom_call.1} parent=5 // pred_check
        _
      $region10: #{tpu_custom_call.1} parent=5 // pred_check_branch
        %199 = sbr.rel (%p196) target = $region12
      $region11: #{tpu_custom_call.1} parent=5 // pred_region
        %s200 = ssub.s32 %s24, 1
        // Predicated region
        $region13: #{tpu_custom_call.1} parent=11 // pred_check
          %p201 = pneg %p113
        $region14: #{tpu_custom_call.1} parent=11 // pred_check_branch
          %203 = sbr.rel (%p201) target = $region16
        $region15: #{tpu_custom_call.1} parent=11 // pred_region
          _
        $region16: #{tpu_custom_call.1} parent=11 // pred_fallthru
          _
        // Predicated region
        $region17: #{tpu_custom_call.1} parent=11 // pred_check
          %p204 = pneg %p134
        $region18: #{tpu_custom_call.1} parent=11 // pred_check_branch
          %206 = sbr.rel (%p204) target = $region20
        $region19: #{tpu_custom_call.1} parent=11 // pred_region
          _
        $region20: #{tpu_custom_call.1} parent=11 // pred_fallthru
          _
      $region12: #{tpu_custom_call.1} parent=5 // pred_fallthru
        _
      %p207 = scmp.lt.s32.totalorder %s24, 2
      // Predicated region
      $region21: #{tpu_custom_call.1} parent=5 // pred_check
        %p208 = pneg %p207
      $region22: #{tpu_custom_call.1} parent=5 // pred_check_branch
        %210 = sbr.rel (%p208) target = $region24
      $region23: #{tpu_custom_call.1} parent=5 // pred_region
        // Predicated region
        $region25: #{tpu_custom_call.1} parent=23 // pred_check
          %p211 = pneg %p58
        $region26: #{tpu_custom_call.1} parent=23 // pred_check_branch
          %213 = sbr.rel (%p211) target = $region28
        $region27: #{tpu_custom_call.1} parent=23 // pred_region
          %s214 = sand.u32 %s48, 1
          %s215 = scalar_lea.sflag [#allocation5], %s214
          %s216 = sand.u32 %s48, 1
          %s217 = smul.addr %s216, 4
          %s218 = scalar_lea.vmem [#allocation4], %s217
          %s220 = ssub.s32 64, 64
          %221 = vsyncadd %s215, %s220
          %s222 = sadd.s32 %s32, %s31
          %s223 = smul.addr %s222, 64
          %s224 = scalar_lea.hbm %s0, %s223
          %s226 = sshll.u32 %s218, 4
          %s227 = int_to_ptr.vmem [resolvable:$true] %s226
          %229 = dma.hbm_to_vmem [thread:$0]  %s224, 64, %s227, %s215
        $region28: #{tpu_custom_call.1} parent=23 // pred_fallthru
          _
        // Predicated region
        $region29: #{tpu_custom_call.1} parent=23 // pred_check
          %p230 = pneg %p86
        $region30: #{tpu_custom_call.1} parent=23 // pred_check_branch
          %232 = sbr.rel (%p230) target = $region32
        $region31: #{tpu_custom_call.1} parent=23 // pred_region
          %s233 = sand.u32 %s76, 1
          %s234 = scalar_lea.sflag [#allocation8], %s233
          %s235 = sand.u32 %s76, 1
          %s236 = smul.addr %s235, 4
          %s237 = scalar_lea.vmem [#allocation7], %s236
          %s239 = ssub.s32 64, 64
          %240 = vsyncadd %s234, %s239
          %s241 = sadd.s32 %s32, %s31
          %s242 = smul.addr %s241, 64
          %s243 = scalar_lea.hbm %s1, %s242
          %s245 = sshll.u32 %s237, 4
          %s246 = int_to_ptr.vmem [resolvable:$true] %s245
          %248 = dma.hbm_to_vmem [thread:$0]  %s243, 64, %s246, %s234
        $region32: #{tpu_custom_call.1} parent=23 // pred_fallthru
          _
      $region24: #{tpu_custom_call.1} parent=5 // pred_fallthru
        _
      %p249 = scmp.le.s32.totalorder 1, %s24
      %p250 = scmp.lt.s32.totalorder %s24, 3
      %p251 = pnand %p249, %p250
      %p252 = pneg %p251
      // Predicated region
      $region33: #{tpu_custom_call.1} parent=5 // pred_check
        _
      $region34: #{tpu_custom_call.1} parent=5 // pred_check_branch
        %254 = sbr.rel (%p251) target = $region36
      $region35: #{tpu_custom_call.1} parent=5 // pred_region
        %s255 = ssub.s32 %s24, 1
        %s256 = sand.u32 %s51, 1
        %s257 = scalar_lea.sflag [#allocation5], %s256
        %s258 = sand.u32 %s51, 1
        %s259 = smul.addr %s258, 4
        %s260 = scalar_lea.vmem [#allocation4], %s259
        // Predicated region
        $region37: #{tpu_custom_call.1} parent=35 // pred_check
          %p261 = pneg %p64
        $region38: #{tpu_custom_call.1} parent=35 // pred_check_branch
          %263 = sbr.rel (%p261) target = $region40
        $region39: #{tpu_custom_call.1} parent=35 // pred_region
          %264 = dma.done %s257, 64
        $region40: #{tpu_custom_call.1} parent=35 // pred_fallthru
          _
        %s265 = sand.u32 %s79, 1
        %s266 = scalar_lea.sflag [#allocation8], %s265
        %s267 = sand.u32 %s79, 1
        %s268 = smul.addr %s267, 4
        %s269 = scalar_lea.vmem [#allocation7], %s268
        // Predicated region
        $region41: #{tpu_custom_call.1} parent=35 // pred_check
          %p270 = pneg %p92
        $region42: #{tpu_custom_call.1} parent=35 // pred_check_branch
          %272 = sbr.rel (%p270) target = $region44
        $region43: #{tpu_custom_call.1} parent=35 // pred_region
          %273 = dma.done %s266, 64
        $region44: #{tpu_custom_call.1} parent=35 // pred_fallthru
          _
        %s274 = sand.u32 %s51, 1
        %s275 = scalar_lea.sflag [#allocation5], %s274
        %s276 = sand.u32 %s51, 1
        %s277 = smul.addr %s276, 4
        %s278 = scalar_lea.vmem [#allocation4], %s277
        %p279 = pneg %p64
        %p280 = pneg %p61
        %s281 = sand.u32 %s79, 1
        %s282 = scalar_lea.sflag [#allocation8], %s281
        %s283 = sand.u32 %s79, 1
        %s284 = smul.addr %s283, 4
        %s285 = scalar_lea.vmem [#allocation7], %s284
        %p286 = pneg %p92
        %p287 = pneg %p89
        %p288 = pneg %p113
        %p289 = pneg %p110
        %p290 = pneg %p134
        %p291 = pneg %p131
        %p292 = pneg %p160
        %p293 = pneg %p157
        %s294 = sand.u32 %s147, 1
        %s295 = scalar_lea.sflag [#allocation6], %s294
        %s296 = sand.u32 %s147, 1
        %s297 = smul.addr %s296, 8
        %s298 = scalar_lea.vmem [#allocation9], %s297
        %p299 = pneg %p186
        %p300 = pneg %p183
        %s301 = sand.u32 %s173, 1
        %s302 = scalar_lea.sflag [#allocation11], %s301
        %s303 = sand.u32 %s173, 1
        %s304 = smul.addr %s303, 4
        %s305 = scalar_lea.vmem [#allocation10], %s304
        %p307 = scmp.eq.s32.totalorder %s34, 0
        // Predicated region
        $region45: #{tpu_custom_call.1} parent=35 // pred_check
          %p308 = pneg %p307
        $region46: #{tpu_custom_call.1} parent=35 // pred_check_branch
          %310 = sbr.rel (%p308) target = $region48
        $region47: #{tpu_custom_call.1} parent=35 // pred_region
          %vm311 = vcmask 261120
          %312 = vst.msk [vmem:[#allocation2] sm:$0xff] %vm311, 0.0
          %313 = vst.msk [vmem:[#allocation2 + $0x8] sm:$0xff] %vm311, 0.0
          %vm314 = vcmask 125952
          %315 = vst.msk [vmem:[#allocation3] sm:$0xf] %vm314, 0.0
        $region48: #{tpu_custom_call.1} parent=35 // pred_fallthru
          _
        %v316 = vld [vmem:[%s260] sm:$0xf]
        %v317 = vld [vmem:[%s269] sm:$0xf]
        %v318 = vld [vmem:[%s2] sm:$0xf]
        %v319 = vld [vmem:[%s3] sm:$0x1]
        %v321 = vlaneseq
        %v322 = vshrl.u32 %v321, 7
        %v323 = vsub.s32 0, %v322
        %v324 = vrot.slane %v319, %v323
        %vm326 = vcmask 64512
        %v328 = vsel %vm326, %v316, 0
        %vm330 = vcmask 1043456
        %v332 = vsel %vm330, %v318, 0
        %334 = vmatprep.subr.bf16.mxu0 0
        %335 = vmatpush1.bf16.msra.mxu0 %v332
        %336 = vmatprep.subr.bf16.mxu0 0
        %337 = vmatpush1.bf16.msra.mxu0 0
        %338 = vmatprep.subr.bf16.mxu0 0
        %339 = vmatpush1.bf16.msra.mxu0 0
        %340 = vmatprep.subr.bf16.mxu0 0
        %341 = vmatpush1.bf16.msra.mxu0 0
        %342 = vmatprep.subr.bf16.mxu0 0
        %343 = vmatpush1.bf16.msra.mxu0 0
        %344 = vmatprep.subr.bf16.mxu0 0
        %345 = vmatpush1.bf16.msra.mxu0 0
        %346 = vmatprep.subr.bf16.mxu0 0
        %347 = vmatpush1.bf16.msra.mxu0 0
        %348 = vmatprep.subr.bf16.mxu0 0
        %349 = vmatpush1.bf16.msra.mxu0 0
        %350 = vmatprep.subr.bf16.mxu0 0
        %351 = vmatpush1.bf16.msra.mxu0 0
        %352 = vmatprep.subr.bf16.mxu0 0
        %353 = vmatpush1.bf16.msra.mxu0 0
        %354 = vmatprep.subr.bf16.mxu0 0
        %355 = vmatpush1.bf16.msra.mxu0 0
        %356 = vmatprep.subr.bf16.mxu0 0
        %357 = vmatpush1.bf16.msra.mxu0 0
        %358 = vmatprep.subr.bf16.mxu0 0
        %359 = vmatpush1.bf16.msra.mxu0 0
        %360 = vmatprep.subr.bf16.mxu0 0
        %361 = vmatpush1.bf16.msra.mxu0 0
        %362 = vmatprep.subr.bf16.mxu0 0
        %363 = vmatpush1.bf16.msra.mxu0 0
        %364 = vmatprep.subr.bf16.mxu0 0
        %365 = vmatpush1.bf16.msra.mxu0 0
        %366 = vmatprep.mubr.bf16.mxu0 0
        %367 = vmatmul.mubr.bf16.gmra.mrb[0].mxu0 %v328
        %v368 = vpop.f32.mrb[0].mxu0
        %v369 = vadd.f32 %v324, %v368
        %v370 = vpop.f32.mrb[0].mxu0
        %v371 = vpop.f32.mrb[0].mxu0
        %v372 = vpop.f32.mrb[0].mxu0
        %373 = vdwg.mxu0
        %v374 = vmax.f32 %v369, 0.0
        %v375 = vpack.c.bf16 %v374, %v374
        %376 = vxpose.xlu0.c.b16.start [1/8] %v375, 128
        %377 = vxpose.xlu0.c.b16.cont [2/8] 0, 128
        %378 = vxpose.xlu0.c.b16.cont [3/8] 0, 128
        %379 = vxpose.xlu0.c.b16.cont [4/8] 0, 128
        %380 = vxpose.xlu0.c.b16.cont [5/8] 0, 128
        %381 = vxpose.xlu0.c.b16.cont [6/8] 0, 128
        %382 = vxpose.xlu0.c.b16.cont [7/8] 0, 128
        %383 = vxpose.xlu0.c.b16.end [8/8] 0, 128
        %v384 = vpop.trf.xlu0
        %v385 = vpop.trf.xlu0
        %v386 = vpop.trf.xlu0
        %v387 = vpop.trf.xlu0
        %v388 = vpop.trf.xlu0
        %v389 = vpop.trf.xlu0
        %v390 = vpop.trf.xlu0
        %v391 = vpop.trf.xlu0
        %v393 = vsel %vm326, %v384, 0
        %v396 = vsel %vm330, %v317, 0
        %398 = vmatprep.subr.bf16.mxu0 0
        %399 = vmatpush1.bf16.msra.mxu0 %v396
        %400 = vmatprep.subr.bf16.mxu0 0
        %401 = vmatpush1.bf16.msra.mxu0 0
        %402 = vmatprep.subr.bf16.mxu0 0
        %403 = vmatpush1.bf16.msra.mxu0 0
        %404 = vmatprep.subr.bf16.mxu0 0
        %405 = vmatpush1.bf16.msra.mxu0 0
        %406 = vmatprep.subr.bf16.mxu0 0
        %407 = vmatpush1.bf16.msra.mxu0 0
        %408 = vmatprep.subr.bf16.mxu0 0
        %409 = vmatpush1.bf16.msra.mxu0 0
        %410 = vmatprep.subr.bf16.mxu0 0
        %411 = vmatpush1.bf16.msra.mxu0 0
        %412 = vmatprep.subr.bf16.mxu0 0
        %413 = vmatpush1.bf16.msra.mxu0 0
        %414 = vmatprep.subr.bf16.mxu0 0
        %415 = vmatpush1.bf16.msra.mxu0 0
        %416 = vmatprep.subr.bf16.mxu0 0
        %417 = vmatpush1.bf16.msra.mxu0 0
        %418 = vmatprep.subr.bf16.mxu0 0
        %419 = vmatpush1.bf16.msra.mxu0 0
        %420 = vmatprep.subr.bf16.mxu0 0
        %421 = vmatpush1.bf16.msra.mxu0 0
        %422 = vmatprep.subr.bf16.mxu0 0
        %423 = vmatpush1.bf16.msra.mxu0 0
        %424 = vmatprep.subr.bf16.mxu0 0
        %425 = vmatpush1.bf16.msra.mxu0 0
        %426 = vmatprep.subr.bf16.mxu0 0
        %427 = vmatpush1.bf16.msra.mxu0 0
        %428 = vmatprep.subr.bf16.mxu0 0
        %429 = vmatpush1.bf16.msra.mxu0 0
        %430 = vmatprep.mubr.bf16.mxu0 0
        %431 = vmatmul.mubr.bf16.gmra.mrb[0].mxu0 %v393
        %v432 = vpop.f32.mrb[0].mxu0
        %v433 = vadd.f32 0.0, %v432
        %v434 = vpop.f32.mrb[0].mxu0
        %v435 = vpop.f32.mrb[0].mxu0
        %v436 = vadd.f32 0.0, %v435
        %v437 = vpop.f32.mrb[0].mxu0
        %438 = vdwg.mxu0
        %v439 = vld [vmem:[#allocation2] sm:$0xff]
        %v440 = vld [vmem:[#allocation2 + $0x8] sm:$0xff]
        %v441 = vadd.f32 %v439, %v433
        %v442 = vadd.f32 %v440, %v436
        %443 = vst.msk [vmem:[#allocation2] sm:$0xff] %vm326, %v441
        %444 = vst.msk [vmem:[#allocation2 + $0x8] sm:$0xff] %vm326, %v442
        %v445 = vld [vmem:[#allocation3] sm:$0x1]
        %vm446 = vcmask 130048
        %v447 = vsel %vm446, %v374, 0.0
        %v448 = vrot.slane %v447, 4
        %v449 = vadd.f32 %v447, %v448
        %v450 = vrot.slane %v449, 2
        %v451 = vadd.f32 %v449, %v450
        %v452 = vrot.slane %v451, 1
        %v453 = vadd.f32 %v451, %v452
        %v454 = vadd.f32 %v445, %v453
        %vm455 = vcmask 122880
        %456 = vst.msk [vmem:[#allocation3] sm:$0x1] %vm455, %v454
        %v458 = vunpack.c.l.b16 %v316
        %v459 = vpack.c.b16 %v458, %v458
        %460 = vrot.lane.b32.xlu0 %v459, 120
        %v461 = vpop.permute.xlu0 %460
        %v463 = vsel %vm326, %v461, 0
        %465 = vmatprep.subr.bf16.mxu0 0
        %466 = vmatpush1.bf16.msra.mxu0 %v332
        %467 = vmatprep.subr.bf16.mxu0 0
        %468 = vmatpush1.bf16.msra.mxu0 0
        %469 = vmatprep.subr.bf16.mxu0 0
        %470 = vmatpush1.bf16.msra.mxu0 0
        %471 = vmatprep.subr.bf16.mxu0 0
        %472 = vmatpush1.bf16.msra.mxu0 0
        %473 = vmatprep.subr.bf16.mxu0 0
        %474 = vmatpush1.bf16.msra.mxu0 0
        %475 = vmatprep.subr.bf16.mxu0 0
        %476 = vmatpush1.bf16.msra.mxu0 0
        %477 = vmatprep.subr.bf16.mxu0 0
        %478 = vmatpush1.bf16.msra.mxu0 0
        %479 = vmatprep.subr.bf16.mxu0 0
        %480 = vmatpush1.bf16.msra.mxu0 0
        %481 = vmatprep.subr.bf16.mxu0 0
        %482 = vmatpush1.bf16.msra.mxu0 0
        %483 = vmatprep.subr.bf16.mxu0 0
        %484 = vmatpush1.bf16.msra.mxu0 0
        %485 = vmatprep.subr.bf16.mxu0 0
        %486 = vmatpush1.bf16.msra.mxu0 0
        %487 = vmatprep.subr.bf16.mxu0 0
        %488 = vmatpush1.bf16.msra.mxu0 0
        %489 = vmatprep.subr.bf16.mxu0 0
        %490 = vmatpush1.bf16.msra.mxu0 0
        %491 = vmatprep.subr.bf16.mxu0 0
        %492 = vmatpush1.bf16.msra.mxu0 0
        %493 = vmatprep.subr.bf16.mxu0 0
        %494 = vmatpush1.bf16.msra.mxu0 0
        %495 = vmatprep.subr.bf16.mxu0 0
        %496 = vmatpush1.bf16.msra.mxu0 0
        %497 = vmatprep.mubr.bf16.mxu0 0
        %498 = vmatmul.mubr.bf16.gmra.mrb[0].mxu0 %v463
        %v499 = vpop.f32.mrb[0].mxu0
        %v500 = vadd.f32 %v324, %v499
        %v501 = vpop.f32.mrb[0].mxu0
        %v502 = vpop.f32.mrb[0].mxu0
        %v503 = vpop.f32.mrb[0].mxu0
        %504 = vdwg.mxu0
        %v505 = vmax.f32 %v500, 0.0
        %v506 = vpack.c.bf16 %v505, %v505
        %507 = vxpose.xlu0.c.b16.start [1/8] %v506, 128
        %508 = vxpose.xlu0.c.b16.cont [2/8] 0, 128
        %509 = vxpose.xlu0.c.b16.cont [3/8] 0, 128
        %510 = vxpose.xlu0.c.b16.cont [4/8] 0, 128
        %511 = vxpose.xlu0.c.b16.cont [5/8] 0, 128
        %512 = vxpose.xlu0.c.b16.cont [6/8] 0, 128
        %513 = vxpose.xlu0.c.b16.cont [7/8] 0, 128
        %514 = vxpose.xlu0.c.b16.end [8/8] 0, 128
        %v515 = vpop.trf.xlu0
        %v516 = vpop.trf.xlu0
        %v517 = vpop.trf.xlu0
        %v518 = vpop.trf.xlu0
        %v519 = vpop.trf.xlu0
        %v520 = vpop.trf.xlu0
        %v521 = vpop.trf.xlu0
        %v522 = vpop.trf.xlu0
        %v524 = vunpack.c.l.b16 %v317
        %v525 = vpack.c.b16 %v524, %v524
        %526 = vrot.lane.b32.xlu0 %v525, 120
        %v527 = vpop.permute.xlu0 %526
        %v529 = vsel %vm326, %v515, 0
        %v532 = vsel %vm330, %v527, 0
        %534 = vmatprep.subr.bf16.mxu0 0
        %535 = vmatpush1.bf16.msra.mxu0 %v532
        %536 = vmatprep.subr.bf16.mxu0 0
        %537 = vmatpush1.bf16.msra.mxu0 0
        %538 = vmatprep.subr.bf16.mxu0 0
        %539 = vmatpush1.bf16.msra.mxu0 0
        %540 = vmatprep.subr.bf16.mxu0 0
        %541 = vmatpush1.bf16.msra.mxu0 0
        %542 = vmatprep.subr.bf16.mxu0 0
        %543 = vmatpush1.bf16.msra.mxu0 0
        %544 = vmatprep.subr.bf16.mxu0 0
        %545 = vmatpush1.bf16.msra.mxu0 0
        %546 = vmatprep.subr.bf16.mxu0 0
        %547 = vmatpush1.bf16.msra.mxu0 0
        %548 = vmatprep.subr.bf16.mxu0 0
        %549 = vmatpush1.bf16.msra.mxu0 0
        %550 = vmatprep.subr.bf16.mxu0 0
        %551 = vmatpush1.bf16.msra.mxu0 0
        %552 = vmatprep.subr.bf16.mxu0 0
        %553 = vmatpush1.bf16.msra.mxu0 0
        %554 = vmatprep.subr.bf16.mxu0 0
        %555 = vmatpush1.bf16.msra.mxu0 0
        %556 = vmatprep.subr.bf16.mxu0 0
        %557 = vmatpush1.bf16.msra.mxu0 0
        %558 = vmatprep.subr.bf16.mxu0 0
        %559 = vmatpush1.bf16.msra.mxu0 0
        %560 = vmatprep.subr.bf16.mxu0 0
        %561 = vmatpush1.bf16.msra.mxu0 0
        %562 = vmatprep.subr.bf16.mxu0 0
        %563 = vmatpush1.bf16.msra.mxu0 0
        %564 = vmatprep.subr.bf16.mxu0 0
        %565 = vmatpush1.bf16.msra.mxu0 0
        %566 = vmatprep.mubr.bf16.mxu0 0
        %567 = vmatmul.mubr.bf16.gmra.mrb[0].mxu0 %v529
        %v568 = vpop.f32.mrb[0].mxu0
        %v569 = vadd.f32 0.0, %v568
        %v570 = vpop.f32.mrb[0].mxu0
        %v571 = vpop.f32.mrb[0].mxu0
        %v572 = vadd.f32 0.0, %v571
        %v573 = vpop.f32.mrb[0].mxu0
        %574 = vdwg.mxu0
        %v575 = vld [vmem:[#allocation2] sm:$0xff]
        %v576 = vld [vmem:[#allocation2 + $0x8] sm:$0xff]
        %579 = vrot.lane.b32.xlu0 %v569, 8
        %v580 = vpop.permute.xlu0 %579
        %581 = vrot.lane.b32.xlu0 %v572, 8
        %v582 = vpop.permute.xlu0 %581
        %v585 = vadd.f32 %v575, %v580
        %v586 = vadd.f32 %v576, %v582
        %vm587 = vcmask 130112
        %588 = vst.msk [vmem:[#allocation2] sm:$0xff] %vm587, %v585
        %589 = vst.msk [vmem:[#allocation2 + $0x8] sm:$0xff] %vm587, %v586
        %v590 = vld [vmem:[#allocation3 + $0x1] sm:$0x1]
        %v591 = vsel %vm446, %v505, 0.0
        %v592 = vrot.slane %v591, 4
        %v593 = vadd.f32 %v591, %v592
        %v594 = vrot.slane %v593, 2
        %v595 = vadd.f32 %v593, %v594
        %v596 = vrot.slane %v595, 1
        %v597 = vadd.f32 %v595, %v596
        %v598 = vadd.f32 %v590, %v597
        %599 = vst.msk [vmem:[#allocation3 + $0x1] sm:$0x1] %vm455, %v598
        %600 = vrot.lane.b32.xlu0 %v459, 112
        %v601 = vpop.permute.xlu0 %600
        %v603 = vsel %vm326, %v601, 0
        %605 = vmatprep.subr.bf16.mxu0 0
        %606 = vmatpush1.bf16.msra.mxu0 %v332
        %607 = vmatprep.subr.bf16.mxu0 0
        %608 = vmatpush1.bf16.msra.mxu0 0
        %609 = vmatprep.subr.bf16.mxu0 0
        %610 = vmatpush1.bf16.msra.mxu0 0
        %611 = vmatprep.subr.bf16.mxu0 0
        %612 = vmatpush1.bf16.msra.mxu0 0
        %613 = vmatprep.subr.bf16.mxu0 0
        %614 = vmatpush1.bf16.msra.mxu0 0
        %615 = vmatprep.subr.bf16.mxu0 0
        %616 = vmatpush1.bf16.msra.mxu0 0
        %617 = vmatprep.subr.bf16.mxu0 0
        %618 = vmatpush1.bf16.msra.mxu0 0
        %619 = vmatprep.subr.bf16.mxu0 0
        %620 = vmatpush1.bf16.msra.mxu0 0
        %621 = vmatprep.subr.bf16.mxu0 0
        %622 = vmatpush1.bf16.msra.mxu0 0
        %623 = vmatprep.subr.bf16.mxu0 0
        %624 = vmatpush1.bf16.msra.mxu0 0
        %625 = vmatprep.subr.bf16.mxu0 0
        %626 = vmatpush1.bf16.msra.mxu0 0
        %627 = vmatprep.subr.bf16.mxu0 0
        %628 = vmatpush1.bf16.msra.mxu0 0
        %629 = vmatprep.subr.bf16.mxu0 0
        %630 = vmatpush1.bf16.msra.mxu0 0
        %631 = vmatprep.subr.bf16.mxu0 0
        %632 = vmatpush1.bf16.msra.mxu0 0
        %633 = vmatprep.subr.bf16.mxu0 0
        %634 = vmatpush1.bf16.msra.mxu0 0
        %635 = vmatprep.subr.bf16.mxu0 0
        %636 = vmatpush1.bf16.msra.mxu0 0
        %637 = vmatprep.mubr.bf16.mxu0 0
        %638 = vmatmul.mubr.bf16.gmra.mrb[0].mxu0 %v603
        %v639 = vpop.f32.mrb[0].mxu0
        %v640 = vadd.f32 %v324, %v639
        %v641 = vpop.f32.mrb[0].mxu0
        %v642 = vpop.f32.mrb[0].mxu0
        %v643 = vpop.f32.mrb[0].mxu0
        %644 = vdwg.mxu0
        %v645 = vmax.f32 %v640, 0.0
        %v646 = vpack.c.bf16 %v645, %v645
        %647 = vxpose.xlu0.c.b16.start [1/8] %v646, 128
        %648 = vxpose.xlu0.c.b16.cont [2/8] 0, 128
        %649 = vxpose.xlu0.c.b16.cont [3/8] 0, 128
        %650 = vxpose.xlu0.c.b16.cont [4/8] 0, 128
        %651 = vxpose.xlu0.c.b16.cont [5/8] 0, 128
        %652 = vxpose.xlu0.c.b16.cont [6/8] 0, 128
        %653 = vxpose.xlu0.c.b16.cont [7/8] 0, 128
        %654 = vxpose.xlu0.c.b16.end [8/8] 0, 128
        %v655 = vpop.trf.xlu0
        %v656 = vpop.trf.xlu0
        %v657 = vpop.trf.xlu0
        %v658 = vpop.trf.xlu0
        %v659 = vpop.trf.xlu0
        %v660 = vpop.trf.xlu0
        %v661 = vpop.trf.xlu0
        %v662 = vpop.trf.xlu0
        %663 = vrot.lane.b32.xlu0 %v525, 112
        %v664 = vpop.permute.xlu0 %663
        %v666 = vsel %vm326, %v655, 0
        %v669 = vsel %vm330, %v664, 0
        %671 = vmatprep.subr.bf16.mxu0 0
        %672 = vmatpush1.bf16.msra.mxu0 %v669
        %673 = vmatprep.subr.bf16.mxu0 0
        %674 = vmatpush1.bf16.msra.mxu0 0
        %675 = vmatprep.subr.bf16.mxu0 0
        %676 = vmatpush1.bf16.msra.mxu0 0
        %677 = vmatprep.subr.bf16.mxu0 0
        %678 = vmatpush1.bf16.msra.mxu0 0
        %679 = vmatprep.subr.bf16.mxu0 0
        %680 = vmatpush1.bf16.msra.mxu0 0
        %681 = vmatprep.subr.bf16.mxu0 0
        %682 = vmatpush1.bf16.msra.mxu0 0
        %683 = vmatprep.subr.bf16.mxu0 0
        %684 = vmatpush1.bf16.msra.mxu0 0
        %685 = vmatprep.subr.bf16.mxu0 0
        %686 = vmatpush1.bf16.msra.mxu0 0
        %687 = vmatprep.subr.bf16.mxu0 0
        %688 = vmatpush1.bf16.msra.mxu0 0
        %689 = vmatprep.subr.bf16.mxu0 0
        %690 = vmatpush1.bf16.msra.mxu0 0
        %691 = vmatprep.subr.bf16.mxu0 0
        %692 = vmatpush1.bf16.msra.mxu0 0
        %693 = vmatprep.subr.bf16.mxu0 0
        %694 = vmatpush1.bf16.msra.mxu0 0
        %695 = vmatprep.subr.bf16.mxu0 0
        %696 = vmatpush1.bf16.msra.mxu0 0
        %697 = vmatprep.subr.bf16.mxu0 0
        %698 = vmatpush1.bf16.msra.mxu0 0
        %699 = vmatprep.subr.bf16.mxu0 0
        %700 = vmatpush1.bf16.msra.mxu0 0
        %701 = vmatprep.subr.bf16.mxu0 0
        %702 = vmatpush1.bf16.msra.mxu0 0
        %703 = vmatprep.mubr.bf16.mxu0 0
        %704 = vmatmul.mubr.bf16.gmra.mrb[0].mxu0 %v666
        %v705 = vpop.f32.mrb[0].mxu0
        %v706 = vadd.f32 0.0, %v705
        %v707 = vpop.f32.mrb[0].mxu0
        %v708 = vpop.f32.mrb[0].mxu0
        %v709 = vadd.f32 0.0, %v708
        %v710 = vpop.f32.mrb[0].mxu0
        %711 = vdwg.mxu0
        %v712 = vld [vmem:[#allocation2] sm:$0xff]
        %v713 = vld [vmem:[#allocation2 + $0x8] sm:$0xff]
        %716 = vrot.lane.b32.xlu0 %v706, 16
        %v717 = vpop.permute.xlu0 %716
        %718 = vrot.lane.b32.xlu0 %v709, 16
        %v719 = vpop.permute.xlu0 %718
        %v722 = vadd.f32 %v712, %v717
        %v723 = vadd.f32 %v713, %v719
        %vm724 = vcmask 195712
        %725 = vst.msk [vmem:[#allocation2] sm:$0xff] %vm724, %v722
        %726 = vst.msk [vmem:[#allocation2 + $0x8] sm:$0xff] %vm724, %v723
        %v727 = vld [vmem:[#allocation3 + $0x2] sm:$0x1]
        %v728 = vsel %vm446, %v645, 0.0
        %v729 = vrot.slane %v728, 4
        %v730 = vadd.f32 %v728, %v729
        %v731 = vrot.slane %v730, 2
        %v732 = vadd.f32 %v730, %v731
        %v733 = vrot.slane %v732, 1
        %v734 = vadd.f32 %v732, %v733
        %v735 = vadd.f32 %v727, %v734
        %736 = vst.msk [vmem:[#allocation3 + $0x2] sm:$0x1] %vm455, %v735
        %737 = vrot.lane.b32.xlu0 %v459, 104
        %v738 = vpop.permute.xlu0 %737
        %v740 = vsel %vm326, %v738, 0
        %742 = vmatprep.subr.bf16.mxu0 0
        %743 = vmatpush1.bf16.msra.mxu0 %v332
        %744 = vmatprep.subr.bf16.mxu0 0
        %745 = vmatpush1.bf16.msra.mxu0 0
        %746 = vmatprep.subr.bf16.mxu0 0
        %747 = vmatpush1.bf16.msra.mxu0 0
        %748 = vmatprep.subr.bf16.mxu0 0
        %749 = vmatpush1.bf16.msra.mxu0 0
        %750 = vmatprep.subr.bf16.mxu0 0
        %751 = vmatpush1.bf16.msra.mxu0 0
        %752 = vmatprep.subr.bf16.mxu0 0
        %753 = vmatpush1.bf16.msra.mxu0 0
        %754 = vmatprep.subr.bf16.mxu0 0
        %755 = vmatpush1.bf16.msra.mxu0 0
        %756 = vmatprep.subr.bf16.mxu0 0
        %757 = vmatpush1.bf16.msra.mxu0 0
        %758 = vmatprep.subr.bf16.mxu0 0
        %759 = vmatpush1.bf16.msra.mxu0 0
        %760 = vmatprep.subr.bf16.mxu0 0
        %761 = vmatpush1.bf16.msra.mxu0 0
        %762 = vmatprep.subr.bf16.mxu0 0
        %763 = vmatpush1.bf16.msra.mxu0 0
        %764 = vmatprep.subr.bf16.mxu0 0
        %765 = vmatpush1.bf16.msra.mxu0 0
        %766 = vmatprep.subr.bf16.mxu0 0
        %767 = vmatpush1.bf16.msra.mxu0 0
        %768 = vmatprep.subr.bf16.mxu0 0
        %769 = vmatpush1.bf16.msra.mxu0 0
        %770 = vmatprep.subr.bf16.mxu0 0
        %771 = vmatpush1.bf16.msra.mxu0 0
        %772 = vmatprep.subr.bf16.mxu0 0
        %773 = vmatpush1.bf16.msra.mxu0 0
        %774 = vmatprep.mubr.bf16.mxu0 0
        %775 = vmatmul.mubr.bf16.gmra.mrb[0].mxu0 %v740
        %v776 = vpop.f32.mrb[0].mxu0
        %v777 = vadd.f32 %v324, %v776
        %v778 = vpop.f32.mrb[0].mxu0
        %v779 = vpop.f32.mrb[0].mxu0
        %v780 = vpop.f32.mrb[0].mxu0
        %781 = vdwg.mxu0
        %v782 = vmax.f32 %v777, 0.0
        %v783 = vpack.c.bf16 %v782, %v782
        %784 = vxpose.xlu0.c.b16.start [1/8] %v783, 128
        %785 = vxpose.xlu0.c.b16.cont [2/8] 0, 128
        %786 = vxpose.xlu0.c.b16.cont [3/8] 0, 128
        %787 = vxpose.xlu0.c.b16.cont [4/8] 0, 128
        %788 = vxpose.xlu0.c.b16.cont [5/8] 0, 128
        %789 = vxpose.xlu0.c.b16.cont [6/8] 0, 128
        %790 = vxpose.xlu0.c.b16.cont [7/8] 0, 128
        %791 = vxpose.xlu0.c.b16.end [8/8] 0, 128
        %v792 = vpop.trf.xlu0
        %v793 = vpop.trf.xlu0
        %v794 = vpop.trf.xlu0
        %v795 = vpop.trf.xlu0
        %v796 = vpop.trf.xlu0
        %v797 = vpop.trf.xlu0
        %v798 = vpop.trf.xlu0
        %v799 = vpop.trf.xlu0
        %800 = vrot.lane.b32.xlu0 %v525, 104
        %v801 = vpop.permute.xlu0 %800
        %v803 = vsel %vm326, %v792, 0
        %v806 = vsel %vm330, %v801, 0
        %808 = vmatprep.subr.bf16.mxu0 0
        %809 = vmatpush1.bf16.msra.mxu0 %v806
        %810 = vmatprep.subr.bf16.mxu0 0
        %811 = vmatpush1.bf16.msra.mxu0 0
        %812 = vmatprep.subr.bf16.mxu0 0
        %813 = vmatpush1.bf16.msra.mxu0 0
        %814 = vmatprep.subr.bf16.mxu0 0
        %815 = vmatpush1.bf16.msra.mxu0 0
        %816 = vmatprep.subr.bf16.mxu0 0
        %817 = vmatpush1.bf16.msra.mxu0 0
        %818 = vmatprep.subr.bf16.mxu0 0
        %819 = vmatpush1.bf16.msra.mxu0 0
        %820 = vmatprep.subr.bf16.mxu0 0
        %821 = vmatpush1.bf16.msra.mxu0 0
        %822 = vmatprep.subr.bf16.mxu0 0
        %823 = vmatpush1.bf16.msra.mxu0 0
        %824 = vmatprep.subr.bf16.mxu0 0
        %825 = vmatpush1.bf16.msra.mxu0 0
        %826 = vmatprep.subr.bf16.mxu0 0
        %827 = vmatpush1.bf16.msra.mxu0 0
        %828 = vmatprep.subr.bf16.mxu0 0
        %829 = vmatpush1.bf16.msra.mxu0 0
        %830 = vmatprep.subr.bf16.mxu0 0
        %831 = vmatpush1.bf16.msra.mxu0 0
        %832 = vmatprep.subr.bf16.mxu0 0
        %833 = vmatpush1.bf16.msra.mxu0 0
        %834 = vmatprep.subr.bf16.mxu0 0
        %835 = vmatpush1.bf16.msra.mxu0 0
        %836 = vmatprep.subr.bf16.mxu0 0
        %837 = vmatpush1.bf16.msra.mxu0 0
        %838 = vmatprep.subr.bf16.mxu0 0
        %839 = vmatpush1.bf16.msra.mxu0 0
        %840 = vmatprep.mubr.bf16.mxu0 0
        %841 = vmatmul.mubr.bf16.gmra.mrb[0].mxu0 %v803
        %v842 = vpop.f32.mrb[0].mxu0
        %v843 = vadd.f32 0.0, %v842
        %v844 = vpop.f32.mrb[0].mxu0
        %v845 = vpop.f32.mrb[0].mxu0
        %v846 = vadd.f32 0.0, %v845
        %v847 = vpop.f32.mrb[0].mxu0
        %848 = vdwg.mxu0
        %v849 = vld [vmem:[#allocation2] sm:$0xff]
        %v850 = vld [vmem:[#allocation2 + $0x8] sm:$0xff]
        %853 = vrot.lane.b32.xlu0 %v843, 24
        %v854 = vpop.permute.xlu0 %853
        %855 = vrot.lane.b32.xlu0 %v846, 24
        %v856 = vpop.permute.xlu0 %855
        %v859 = vadd.f32 %v849, %v854
        %v860 = vadd.f32 %v850, %v856
        %vm861 = vcmask 261312
        %862 = vst.msk [vmem:[#allocation2] sm:$0xff] %vm861, %v859
        %863 = vst.msk [vmem:[#allocation2 + $0x8] sm:$0xff] %vm861, %v860
        %v864 = vld [vmem:[#allocation3 + $0x3] sm:$0x1]
        %v865 = vsel %vm446, %v782, 0.0
        %v866 = vrot.slane %v865, 4
        %v867 = vadd.f32 %v865, %v866
        %v868 = vrot.slane %v867, 2
        %v869 = vadd.f32 %v867, %v868
        %v870 = vrot.slane %v869, 1
        %v871 = vadd.f32 %v869, %v870
        %v872 = vadd.f32 %v864, %v871
        %873 = vst.msk [vmem:[#allocation3 + $0x3] sm:$0x1] %vm455, %v872
        // Predicated region
        $region49: #{tpu_custom_call.1} parent=35 // pred_check
          %p874 = pneg %p307
        $region50: #{tpu_custom_call.1} parent=35 // pred_check_branch
          %876 = sbr.rel (%p874) target = $region52
        $region51: #{tpu_custom_call.1} parent=35 // pred_region
          %v877 = vld [vmem:[#allocation2] sm:$0xff]
          %v878 = vld [vmem:[#allocation2 + $0x8] sm:$0xff]
          %v879 = vpack.c.bf16 %v878, %v877
          %v881 = vunpack.c.l.b16 %v879
          %v882 = vunpack.c.h.b16 %v879
          %v883 = vpack.c.b16 %v881, %v881
          %v884 = vpack.c.b16 %v882, %v882
          %vm887 = vcmask 257024
          %888 = vst.msk [vmem:[%s298] sm:$0xf] %vm887, %v883
          %889 = vst.msk [vmem:[%s298 + $0x4] sm:$0xf] %vm887, %v884
          %v890 = vld [vmem:[#allocation3] sm:$0xf]
          %vm891 = vcmask 125952
          %892 = vst.msk [vmem:[%s305] sm:$0xf] %vm891, %v890
        $region52: #{tpu_custom_call.1} parent=35 // pred_fallthru
          _
        %s893 = sand.u32 %s147, 1
        %s894 = scalar_lea.sflag [#allocation6], %s893
        %s895 = sand.u32 %s147, 1
        %s896 = smul.addr %s895, 8
        %s897 = scalar_lea.vmem [#allocation9], %s896
        %s898 = sand.u32 %s173, 1
        %s899 = scalar_lea.sflag [#allocation11], %s898
        %s900 = sand.u32 %s173, 1
        %s901 = smul.addr %s900, 4
        %s902 = scalar_lea.vmem [#allocation10], %s901
        // Predicated region
        $region53: #{tpu_custom_call.1} parent=35 // pred_check
          %p903 = pneg %p157
        $region54: #{tpu_custom_call.1} parent=35 // pred_check_branch
          %905 = sbr.rel (%p903) target = $region56
        $region55: #{tpu_custom_call.1} parent=35 // pred_region
          %s907 = ssub.s32 128, 128
          %908 = vsyncadd %s894, %s907
          %s909 = smul.addr %s33, 2
          %s910 = smul.addr %s909, 64
          %s911 = scalar_lea.hbm %s4, %s910
          %s912 = sshll.u32 %s897, 4
          %s913 = int_to_ptr.vmem [resolvable:$true] %s912
          %918 = dma.vmem_to_hbm [thread:$0]  %s913, 128, %s911, %s894, 64, 64, 4
        $region56: #{tpu_custom_call.1} parent=35 // pred_fallthru
          _
        // Predicated region
        $region57: #{tpu_custom_call.1} parent=35 // pred_check
          %p919 = pneg %p183
        $region58: #{tpu_custom_call.1} parent=35 // pred_check_branch
          %921 = sbr.rel (%p919) target = $region60
        $region59: #{tpu_custom_call.1} parent=35 // pred_region
          %s923 = ssub.s32 64, 64
          %924 = vsyncadd %s899, %s923
          %s925 = smul.addr %s33, 64
          %s926 = scalar_lea.hbm %s5, %s925
          %s928 = sshll.u32 %s902, 4
          %s929 = int_to_ptr.vmem [resolvable:$true] %s928
          %931 = dma.vmem_to_hbm [thread:$0]  %s929, 64, %s926, %s899
        $region60: #{tpu_custom_call.1} parent=35 // pred_fallthru
          _
      $region36: #{tpu_custom_call.1} parent=5 // pred_fallthru
        _
      %p932 = scmp.le.s32.totalorder 2, %s24
      // Predicated region
      $region61: #{tpu_custom_call.1} parent=5 // pred_check
        %p933 = pneg %p932
      $region62: #{tpu_custom_call.1} parent=5 // pred_check_branch
        %935 = sbr.rel (%p933) target = $region64
      $region63: #{tpu_custom_call.1} parent=5 // pred_region
        %s936 = ssub.s32 %s24, 2
        // Predicated region
        $region65: #{tpu_custom_call.1} parent=63 // pred_check
          %p937 = pneg %p163
        $region66: #{tpu_custom_call.1} parent=63 // pred_check_branch
          %939 = sbr.rel (%p937) target = $region68
        $region67: #{tpu_custom_call.1} parent=63 // pred_region
          %s940 = sand.u32 %s148, 1
          %s941 = scalar_lea.sflag [#allocation6], %s940
          %s942 = sand.u32 %s148, 1
          %s943 = smul.addr %s942, 8
          %s944 = scalar_lea.vmem [#allocation9], %s943
          %945 = dma.done %s941, 128
        $region68: #{tpu_custom_call.1} parent=63 // pred_fallthru
          _
        // Predicated region
        $region69: #{tpu_custom_call.1} parent=63 // pred_check
          %p946 = pneg %p189
        $region70: #{tpu_custom_call.1} parent=63 // pred_check_branch
          %948 = sbr.rel (%p946) target = $region72
        $region71: #{tpu_custom_call.1} parent=63 // pred_region
          %s949 = sand.u32 %s174, 1
          %s950 = scalar_lea.sflag [#allocation11], %s949
          %s951 = sand.u32 %s174, 1
          %s952 = smul.addr %s951, 4
          %s953 = scalar_lea.vmem [#allocation10], %s952
          %954 = dma.done %s950, 64
        $region72: #{tpu_custom_call.1} parent=63 // pred_fallthru
          _
      $region64: #{tpu_custom_call.1} parent=5 // pred_fallthru
        _
    $region6: #{tpu_custom_call.1} parent=1 // loop_footer
      %s28 = sadd.s32 1, %s24
    $region7: #{tpu_custom_call.1} parent=1 // loop_footer_branch
      %23 = sbr.rel target = $region3
    $region8: #{tpu_custom_call.1} parent=1 // loop_exit
      _
    %955 = vsyncpa [#allocation5], 1
    %s956 = scalar_lea.sflag [#allocation5], 1
    %957 = vsyncpa %s956, 1
    %958 = vsyncpa [#allocation8], 1
    %s959 = scalar_lea.sflag [#allocation8], 1
    %960 = vsyncpa %s959, 1
    %961 = vsyncpa [#allocation6], 1
    %s962 = scalar_lea.sflag [#allocation6], 1
    %963 = vsyncpa %s962, 1
    %964 = vsyncpa [#allocation11], 1
    %s965 = scalar_lea.sflag [#allocation11], 1
    %966 = vsyncpa %s965, 1

</llo_original>
